<compile_context>
chip_gen: v6e
topology: v6e:2x2x1
jax: 0.10.0
libtpu: 0.0.40
codegen_flags: <defaults>
</compile_context>

<pallas_src>
import jax
import jax.numpy as jnp
from jax.experimental import pallas as pl
from jax.experimental.pallas import tpu as pltpu

IN_CH = 3
OUT_CH1 = 2
OUT_CH2 = 20
KS1 = 3
EPS = 1e-5


def _round_up(n, m):
    return ((n + m - 1) // m) * m


def cnn_eiie_kernel(c3_ref, x_ref, wp_ref, wband_ref, b1_ref, w2_ref, b2_ref,
                    w3_ref, o_ref):
    # c3_ref   : SMEM (2,)            [w3 coeff for portfolio-weight chan, bias]
    # x_ref    : VMEM (BA, 3*T)       flattened input, channel-major per row
    # wp_ref   : VMEM (BA, 1)         portfolio weights
    # wband_ref: VMEM (3*T, N1)       banded conv1 weights (BN1 folded), zero-padded
    # b1_ref   : VMEM (1, N1)         conv1 bias (BN1 folded), zero-padded
    # w2_ref   : VMEM (N1, N2)        conv2 weights (BN2 folded), zero-padded
    # b2_ref   : VMEM (1, N2)         conv2 bias (BN2 folded), zero-padded
    # w3_ref   : VMEM (N2, 1)         conv3 weights (BN3 folded), zero-padded
    # o_ref    : VMEM (BA, 1)
    y1 = jnp.maximum(
        jnp.dot(x_ref[...], wband_ref[...],
                preferred_element_type=jnp.float32) + b1_ref[...], 0.0)
    y2 = jnp.maximum(
        jnp.dot(y1, w2_ref[...],
                preferred_element_type=jnp.float32) + b2_ref[...], 0.0)
    out = jnp.dot(y2, w3_ref[...], preferred_element_type=jnp.float32)
    o_ref[...] = out + c3_ref[0] * wp_ref[...] + c3_ref[1]


def cnn_eiie_forward(s, wport, params):
    """s: (B, A, T, 4), wport: (B, A) -> (B, A)"""
    B, A, T, F = s.shape
    assert F == 4
    (w1c, b1c, g1, be1, m1, v1,
     w2c, b2c, g2, be2, m2, v2,
     w3c, b3c, g3, be3, m3, v3) = params
    assert w2c.shape[3] == T, "conv2 kernel width must equal day_length T"

    BA = B * A
    NT1 = IN_CH * T
    N1 = _round_up(OUT_CH1 * T, 128)
    N2 = _round_up(OUT_CH2, 128)

    # --- input: NCHW permute, drop channel 0, flatten to (B*A, 3*T), channel-major
    x = jnp.transpose(s, (0, 3, 1, 2))[:, 1:, :, :].astype(jnp.float32)   # (B,3,A,T)
    x_flat = jnp.transpose(x, (0, 2, 1, 3)).reshape(BA, NT1)              # (BA,3T)

    # --- fold eval-mode BatchNorm into conv params (exact) ---
    s1 = g1 / jnp.sqrt(v1 + EPS)                                # (2,)
    w1_eff = w1c[:, :, 0, :] * s1[:, None, None]                # (2,3,3) [o,i,k]
    b1_eff = (b1c - m1) * s1 + be1                              # (2,)

    s2 = g2 / jnp.sqrt(v2 + EPS)                                # (20,)
    w2_eff = (w2c[:, :, 0, :] * s2[:, None, None]).reshape(OUT_CH2, OUT_CH1 * T).T
    b2_eff = (b2c - m2) * s2 + be2                              # (20,)

    s3 = g3 / jnp.sqrt(v3 + EPS)                                # (1,)
    w3_vec = w3c[0, :, 0, 0] * s3[0]                            # (21,)
    b3_eff = (b3c[0] - m3[0]) * s3[0] + be3[0]                  # scalar
    w3_main = w3_vec[:OUT_CH2, None]                            # (20, 1)
    c3 = jnp.stack([w3_vec[OUT_CH2], b3_eff]).astype(jnp.float32)  # (2,)

    # --- conv1 as a banded (3T, 2T) matrix (zero padding (0,1) built in) ---
    t_in = jnp.arange(T)[:, None]                               # (T,1)
    t_out = jnp.arange(T)[None, :]                              # (1,T)
    k = t_in - t_out + 1                                        # tap index
    valid = (k >= 0) & (k < KS1)
    kc = jnp.clip(k, 0, KS1 - 1)
    band = jnp.where(valid[None, None, :, :], w1_eff[:, :, kc], 0.0)  # (2,3,T,T)
    wband = jnp.transpose(band, (1, 2, 0, 3)).reshape(NT1, OUT_CH1 * T)
    b1_row = jnp.repeat(b1_eff, T)[None, :]                     # (1, 2T)

    # --- zero-pad lane dims to multiples of 128 (one-time, trace-time) ---
    wband_p = jnp.zeros((NT1, N1), jnp.float32).at[:, :OUT_CH1 * T].set(wband)
    b1_p = jnp.zeros((1, N1), jnp.float32).at[:, :OUT_CH1 * T].set(b1_row)
    w2_p = jnp.zeros((N1, N2), jnp.float32).at[:OUT_CH1 * T, :OUT_CH2].set(w2_eff)
    b2_p = jnp.zeros((1, N2), jnp.float32).at[:, :OUT_CH2].set(b2_eff[None, :])
    w3_p = jnp.zeros((N2, 1), jnp.float32).at[:OUT_CH2, :].set(w3_main)

    wp_col = wport.astype(jnp.float32).reshape(BA, 1)

    out = pl.pallas_call(
        cnn_eiie_kernel,
        out_shape=jax.ShapeDtypeStruct((BA, 1), jnp.float32),
        in_specs=[
            pl.BlockSpec(memory_space=pltpu.MemorySpace.SMEM),   # c3
            pl.BlockSpec(memory_space=pltpu.MemorySpace.VMEM),   # x_flat
            pl.BlockSpec(memory_space=pltpu.MemorySpace.VMEM),   # wp_col
            pl.BlockSpec(memory_space=pltpu.MemorySpace.VMEM),   # wband_p
            pl.BlockSpec(memory_space=pltpu.MemorySpace.VMEM),   # b1_p
            pl.BlockSpec(memory_space=pltpu.MemorySpace.VMEM),   # w2_p
            pl.BlockSpec(memory_space=pltpu.MemorySpace.VMEM),   # b2_p
            pl.BlockSpec(memory_space=pltpu.MemorySpace.VMEM),   # w3_p
        ],
        out_specs=pl.BlockSpec(memory_space=pltpu.MemorySpace.VMEM),
    )(c3, x_flat, wp_col, wband_p, b1_p, w2_p, b2_p, w3_p)
    return out.reshape(B, A)


def reference_forward(s, wport, params):
    """Pure-JAX reference mirroring the PyTorch module (eval-mode BN)."""
    (w1c, b1c, g1, be1, m1, v1,
     w2c, b2c, g2, be2, m2, v2,
     w3c, b3c, g3, be3, m3, v3) = params

    def conv(x, w, b, pad):
        y = jax.lax.conv_general_dilated(
            x, w, window_strides=(1, 1), padding=pad,
            dimension_numbers=('NCHW', 'OIHW', 'NCHW'))
        return y + b[None, :, None, None]

    def bn(x, g, be, m, v):
        return (g[None, :, None, None] * (x - m[None, :, None, None]) /
                jnp.sqrt(v[None, :, None, None] + EPS) + be[None, :, None, None])

    x = jnp.transpose(s, (0, 3, 1, 2))[:, 1:, :, :]
    x = jax.nn.relu(bn(conv(x, w1c, b1c, [(0, 0), (1, 1)]), g1, be1, m1, v1))
    x = jax.nn.relu(bn(conv(x, w2c, b2c, [(0, 0), (0, 0)]), g2, be2, m2, v2))
    x = jnp.concatenate([x, wport[:, None, :, None]], axis=1)
    x = bn(conv(x, w3c, b3c, [(0, 0), (0, 0)]), g3, be3, m3, v3)
    return x[:, 0, :, 0]


def make_params(key, T):
    ks = jax.random.split(key, 18)

    def nrm(k, shape, scale=0.2):
        return scale * jax.random.normal(k, shape, jnp.float32)

    w1c = nrm(ks[0], (OUT_CH1, IN_CH, 1, KS1))
    b1c = nrm(ks[1], (OUT_CH1,))
    g1 = 1.0 + nrm(ks[2], (OUT_CH1,))
    be1 = nrm(ks[3], (OUT_CH1,))
    m1 = nrm(ks[4], (OUT_CH1,))
    v1 = jax.random.uniform(ks[5], (OUT_CH1,), jnp.float32, 0.5, 1.5)

    w2c = nrm(ks[6], (OUT_CH2, OUT_CH1, 1, T))
    b2c = nrm(ks[7], (OUT_CH2,))
    g2 = 1.0 + nrm(ks[8], (OUT_CH2,))
    be2 = nrm(ks[9], (OUT_CH2,))
    m2 = nrm(ks[10], (OUT_CH2,))
    v2 = jax.random.uniform(ks[11], (OUT_CH2,), jnp.float32, 0.5, 1.5)

    w3c = nrm(ks[12], (1, OUT_CH2 + 1, 1, 1))
    b3c = nrm(ks[13], (1,))
    g3 = 1.0 + nrm(ks[14], (1,))
    be3 = nrm(ks[15], (1,))
    m3 = nrm(ks[16], (1,))
    v3 = jax.random.uniform(ks[17], (1,), jnp.float32, 0.5, 1.5)

    return (w1c, b1c, g1, be1, m1, v1,
            w2c, b2c, g2, be2, m2, v2,
            w3c, b3c, g3, be3, m3, v3)


if __name__ == "__main__":
    B, A, T, F = 2, 8, 16, 4   # batch, action_dim (assets), day_length, features

    root = jax.random.PRNGKey(0)
    k_params, k_s, k_w = jax.random.split(root, 3)
    params = make_params(k_params, T)

    s = jax.random.normal(k_s, (B, A, T, F), jnp.float32)
    wport = jax.nn.softmax(jax.random.normal(k_w, (B, A), jnp.float32), axis=-1)

    out = cnn_eiie_forward(s, wport, params)
    out = jax.block_until_ready(out)

    ref = reference_forward(s, wport, params)
    assert out.shape == (B, A), out.shape
    assert jnp.allclose(out, ref, atol=1e-3, rtol=1e-3), (out, ref)

    print("KERNEL_OK")
</pallas_src>

<mosaic_0001>
module attributes {stable_mosaic.version = 11 : i64} {
  func.func @cnn_eiie_kernel(%arg0: memref<2xf32, #tpu.memory_space<smem>>, %arg1: memref<16x48xf32, #tpu.memory_space<vmem>>, %arg2: memref<16x1xf32, #tpu.memory_space<vmem>>, %arg3: memref<48x128xf32, #tpu.memory_space<vmem>>, %arg4: memref<1x128xf32, #tpu.memory_space<vmem>>, %arg5: memref<128x128xf32, #tpu.memory_space<vmem>>, %arg6: memref<1x128xf32, #tpu.memory_space<vmem>>, %arg7: memref<128x1xf32, #tpu.memory_space<vmem>>, %arg8: memref<16x1xf32, #tpu.memory_space<vmem>>) attributes {dimension_semantics = [], scalar_prefetch = 0 : i64, scratch_operands = 0 : i64, tpu.core_type = #tpu.core_type<tc>} {
    %c0 = arith.constant 0 : index
    %c0_0 = arith.constant 0 : index
    %0 = vector.load %arg1[%c0, %c0_0] : memref<16x48xf32, #tpu.memory_space<vmem>>, vector<16x48xf32>
    %c0_1 = arith.constant 0 : index
    %c0_2 = arith.constant 0 : index
    %1 = vector.load %arg3[%c0_1, %c0_2] : memref<48x128xf32, #tpu.memory_space<vmem>>, vector<48x128xf32>
    %cst = arith.constant dense<0.000000e+00> : vector<16x128xf32>
    %2 = tpu.matmul %0, %1, %cst {dimension_numbers = #tpu.dot_dimension_numbers<[1], [0], [0], [1], [0, 0, 1, 1], [], []>} : vector<16x48xf32>, vector<48x128xf32>, vector<16x128xf32> -> vector<16x128xf32>
    %c0_3 = arith.constant 0 : index
    %c0_4 = arith.constant 0 : index
    %3 = vector.load %arg4[%c0_3, %c0_4] : memref<1x128xf32, #tpu.memory_space<vmem>>, vector<1x128xf32>
    %4 = vector.broadcast %3 : vector<1x128xf32> to vector<16x128xf32>
    %5 = arith.addf %2, %4 : vector<16x128xf32>
    %cst_5 = arith.constant 0.000000e+00 : f32
    %6 = vector.broadcast %cst_5 : f32 to vector<16x128xf32>
    %7 = arith.maximumf %5, %6 : vector<16x128xf32>
    %c0_6 = arith.constant 0 : index
    %c0_7 = arith.constant 0 : index
    %8 = vector.load %arg5[%c0_6, %c0_7] : memref<128x128xf32, #tpu.memory_space<vmem>>, vector<128x128xf32>
    %cst_8 = arith.constant dense<0.000000e+00> : vector<16x128xf32>
    %9 = tpu.matmul %7, %8, %cst_8 {dimension_numbers = #tpu.dot_dimension_numbers<[1], [0], [0], [1], [0, 0, 1, 1], [], []>} : vector<16x128xf32>, vector<128x128xf32>, vector<16x128xf32> -> vector<16x128xf32>
    %c0_9 = arith.constant 0 : index
    %c0_10 = arith.constant 0 : index
    %10 = vector.load %arg6[%c0_9, %c0_10] : memref<1x128xf32, #tpu.memory_space<vmem>>, vector<1x128xf32>
    %11 = vector.broadcast %10 : vector<1x128xf32> to vector<16x128xf32>
    %12 = arith.addf %9, %11 : vector<16x128xf32>
    %cst_11 = arith.constant 0.000000e+00 : f32
    %13 = vector.broadcast %cst_11 : f32 to vector<16x128xf32>
    %14 = arith.maximumf %12, %13 : vector<16x128xf32>
    %c0_12 = arith.constant 0 : index
    %c0_13 = arith.constant 0 : index
    %15 = vector.load %arg7[%c0_12, %c0_13] : memref<128x1xf32, #tpu.memory_space<vmem>>, vector<128x1xf32>
    %cst_14 = arith.constant dense<0.000000e+00> : vector<16x1xf32>
    %16 = tpu.matmul %14, %15, %cst_14 {dimension_numbers = #tpu.dot_dimension_numbers<[1], [0], [0], [1], [0, 0, 1, 1], [], []>} : vector<16x128xf32>, vector<128x1xf32>, vector<16x1xf32> -> vector<16x1xf32>
    %c0_15 = arith.constant 0 : index
    %17 = memref.load %arg0[%c0_15] : memref<2xf32, #tpu.memory_space<smem>>
    %c0_16 = arith.constant 0 : index
    %c0_17 = arith.constant 0 : index
    %18 = vector.load %arg2[%c0_16, %c0_17] : memref<16x1xf32, #tpu.memory_space<vmem>>, vector<16x1xf32>
    %19 = vector.broadcast %17 : f32 to vector<16x1xf32>
    %20 = arith.mulf %19, %18 : vector<16x1xf32>
    %21 = arith.addf %16, %20 : vector<16x1xf32>
    %c1 = arith.constant 1 : index
    %22 = memref.load %arg0[%c1] : memref<2xf32, #tpu.memory_space<smem>>
    %23 = vector.broadcast %22 : f32 to vector<16x1xf32>
    %24 = arith.addf %21, %23 : vector<16x1xf32>
    %c0_18 = arith.constant 0 : index
    %c0_19 = arith.constant 0 : index
    %25 = vector.load %arg8[%c0_18, %c0_19] : memref<16x1xf32, #tpu.memory_space<vmem>>, vector<16x1xf32>
    tpu.vector_store %arg8[%c0_18, %c0_19], %24 {strides = array<i32>} : memref<16x1xf32, #tpu.memory_space<vmem>>, vector<16x1xf32>,
    return
  }
}

</mosaic_0001>

<llo_original>
// kernel: tpu_custom_call.1
$region0: #{tpu_custom_call.1}
  #allocation0 [shape = 'u32[]', space=smem, size = 0x4, offset = 0x4, fixed_abs, tag = 'smem constant byte address 0x4 - core index']
  #allocation1 [shape = 'u32[144,128]{1,0:T(1,128)}', space=vmem, size = 0x12000, scoped, tag = 'internal scratch']
  %s0 = inlined_call_operand.vmem [shape: f32[2], index: 0, kind: input, shape index: {}]
  %s1 = inlined_call_operand.vmem [shape: f32[16,48], index: 1, kind: input, shape index: {}]
  %s2 = inlined_call_operand.vmem [shape: f32[16,1], index: 2, kind: input, shape index: {}]
  %s3 = inlined_call_operand.hbm [shape: f32[48,128], index: 3, kind: input, shape index: {}]
  %s4 = inlined_call_operand.vmem [shape: f32[1,128], index: 4, kind: input, shape index: {}]
  %s5 = inlined_call_operand.vmem [shape: f32[128,128], index: 5, kind: input, shape index: {}]
  %s6 = inlined_call_operand.vmem [shape: f32[1,128], index: 6, kind: input, shape index: {}]
  %s7 = inlined_call_operand.vmem [shape: f32[128,1], index: 7, kind: input, shape index: {}]
  %s8 = inlined_call_operand.vmem [shape: f32[16,1], index: 8, kind: output, shape index: {}]
  %s9 = sld [smem:[#allocation0]]
  $region50: #{tpu_custom_call.1} parent=0
    _
  %s11 = ssub.s32 1, %s9
  %s12 = scalar_select 0, %s11, %s9
  $region1: #{tpu_custom_call.1} parent=0
    #allocation2 [shape = 'u8[512]{0}', space=smem, size = 0x200, scoped, tag = 'input window, operand 0, single buffered']
    #allocation3 [shape = 's32[1]{0}', space=sflag, size = 0x4, scoped, tag = 'scoped memory for tpu_custom_call.1']
    #allocation4 [shape = 's32[1]{0}', space=sflag, size = 0x4, scoped, tag = 'scoped memory for tpu_custom_call.1']
    #allocation5 [shape = 'u8[24576]{0}', space=vmem, size = 0x6000, scoped, tag = 'input window, operand 3, single buffered']
    %13 = vsyncpa [#allocation4], 0
    %14 = vsyncpa [#allocation3], 0
    // Predicated region
    $region2: #{tpu_custom_call.1} parent=1 // pred_check
      _
    $region3: #{tpu_custom_call.1} parent=1 // pred_check_branch
      %16 = sbr.rel (0) target = $region5
    $region4: #{tpu_custom_call.1} parent=1 // pred_region
      %s18 = ssub.s32 16, 16
      %19 = vsyncadd [#allocation4], %s18
      %s21 = sshll.u32 %s0, 4
      %s22 = int_to_ptr.vmem [resolvable:$true] %s21
      %24 = dma.vmem_to_smem %s22, 16, [#allocation2], [#allocation4]
    $region5: #{tpu_custom_call.1} parent=1 // pred_fallthru
      _
    // Predicated region
    $region6: #{tpu_custom_call.1} parent=1 // pred_check
      _
    $region7: #{tpu_custom_call.1} parent=1 // pred_check_branch
      %26 = sbr.rel (0) target = $region9
    $region8: #{tpu_custom_call.1} parent=1 // pred_region
      _
    $region9: #{tpu_custom_call.1} parent=1 // pred_fallthru
      _
    // Predicated region
    $region10: #{tpu_custom_call.1} parent=1 // pred_check
      _
    $region11: #{tpu_custom_call.1} parent=1 // pred_check_branch
      %28 = sbr.rel (0) target = $region13
    $region12: #{tpu_custom_call.1} parent=1 // pred_region
      _
    $region13: #{tpu_custom_call.1} parent=1 // pred_fallthru
      _
    // Predicated region
    $region14: #{tpu_custom_call.1} parent=1 // pred_check
      _
    $region15: #{tpu_custom_call.1} parent=1 // pred_check_branch
      %30 = sbr.rel (0) target = $region17
    $region16: #{tpu_custom_call.1} parent=1 // pred_region
      %s32 = ssub.s32 768, 768
      %33 = vsyncadd [#allocation3], %s32
      %s34 = sshll.u32 [#allocation5], 4
      %s35 = int_to_ptr.vmem [resolvable:$true] %s34
      %40 = dma.hbm_to_vmem [thread:$0]  %s3, 768, %s35, [#allocation3], 128, 128, 8
    $region17: #{tpu_custom_call.1} parent=1 // pred_fallthru
      _
    // Predicated region
    $region18: #{tpu_custom_call.1} parent=1 // pred_check
      _
    $region19: #{tpu_custom_call.1} parent=1 // pred_check_branch
      %42 = sbr.rel (0) target = $region21
    $region20: #{tpu_custom_call.1} parent=1 // pred_region
      _
    $region21: #{tpu_custom_call.1} parent=1 // pred_fallthru
      _
    // Predicated region
    $region22: #{tpu_custom_call.1} parent=1 // pred_check
      _
    $region23: #{tpu_custom_call.1} parent=1 // pred_check_branch
      %44 = sbr.rel (0) target = $region25
    $region24: #{tpu_custom_call.1} parent=1 // pred_region
      _
    $region25: #{tpu_custom_call.1} parent=1 // pred_fallthru
      _
    // Predicated region
    $region26: #{tpu_custom_call.1} parent=1 // pred_check
      _
    $region27: #{tpu_custom_call.1} parent=1 // pred_check_branch
      %46 = sbr.rel (0) target = $region29
    $region28: #{tpu_custom_call.1} parent=1 // pred_region
      _
    $region29: #{tpu_custom_call.1} parent=1 // pred_fallthru
      _
    // Predicated region
    $region30: #{tpu_custom_call.1} parent=1 // pred_check
      _
    $region31: #{tpu_custom_call.1} parent=1 // pred_check_branch
      %48 = sbr.rel (0) target = $region33
    $region32: #{tpu_custom_call.1} parent=1 // pred_region
      _
    $region33: #{tpu_custom_call.1} parent=1 // pred_fallthru
      _
    // Predicated region
    $region34: #{tpu_custom_call.1} parent=1 // pred_check
      _
    $region35: #{tpu_custom_call.1} parent=1 // pred_check_branch
      %50 = sbr.rel (0) target = $region37
    $region36: #{tpu_custom_call.1} parent=1 // pred_region
      %51 = dma.done [#allocation4], 16
    $region37: #{tpu_custom_call.1} parent=1 // pred_fallthru
      _
    // Predicated region
    $region38: #{tpu_custom_call.1} parent=1 // pred_check
      _
    $region39: #{tpu_custom_call.1} parent=1 // pred_check_branch
      %53 = sbr.rel (0) target = $region41
    $region40: #{tpu_custom_call.1} parent=1 // pred_region
      %54 = dma.done [#allocation3], 768
    $region41: #{tpu_custom_call.1} parent=1 // pred_fallthru
      _
    %55 = sfence
    %v56 = vld [vmem:[%s1] sm:$0xff]
    %v57 = vld [vmem:[%s1 + $0x8] sm:$0xff]
    %v58 = vld [vmem:[#allocation5] sm:$0xff]
    %v59 = vld [vmem:[#allocation5 + $0x8] sm:$0xff]
    %v60 = vld [vmem:[#allocation5 + $0x10] sm:$0xff]
    %v61 = vld [vmem:[#allocation5 + $0x18] sm:$0xff]
    %v62 = vld [vmem:[#allocation5 + $0x20] sm:$0xff]
    %v63 = vld [vmem:[#allocation5 + $0x28] sm:$0xff]
    %v64 = vld [vmem:[%s4] sm:$0x1]
    %v66 = vlaneseq
    %v67 = vshrl.u32 %v66, 7
    %v68 = vsub.s32 0, %v67
    %v69 = vrot.slane %v64, %v68
    %vm71 = vcmask 392192
    %v73 = vsel %vm71, %v56, 0
    %v76 = vsel %vm71, %v57, 0
    %78 = vmatprep.subr.mxu0 0.0
    %79 = vmatpush1.msra.mxu0 0.0
    %80 = vmatprep.subr.mxu0 0.0
    %81 = vmatpush1.msra.mxu0 0.0
    %82 = vmatprep.subr.mxu0 0.0
    %83 = vmatpush1.msra.mxu0 0.0
    %84 = vmatprep.subr.mxu0 0.0
    %85 = vmatpush1.msra.mxu0 0.0
    %86 = vmatprep.subr.mxu0 0.0
    %87 = vmatpush1.msra.mxu0 0.0
    %88 = vmatprep.subr.mxu0 0.0
    %89 = vmatpush1.msra.mxu0 0.0
    %90 = vmatprep.subr.mxu0 0.0
    %91 = vmatpush1.msra.mxu0 0.0
    %92 = vmatprep.subr.mxu0 0.0
    %93 = vmatpush1.msra.mxu0 0.0
    %94 = vmatprep.subr.mxu0 0.0
    %95 = vmatpush1.msra.mxu0 0.0
    %96 = vmatprep.subr.mxu0 0.0
    %97 = vmatpush1.msra.mxu0 0.0
    %98 = vmatprep.subr.mxu0 0.0
    %99 = vmatpush1.msra.mxu0 %v63
    %100 = vmatprep.subr.mxu0 0.0
    %101 = vmatpush1.msra.mxu0 %v62
    %102 = vmatprep.subr.mxu0 0.0
    %103 = vmatpush1.msra.mxu0 %v61
    %104 = vmatprep.subr.mxu0 0.0
    %105 = vmatpush1.msra.mxu0 %v60
    %106 = vmatprep.subr.mxu0 0.0
    %107 = vmatpush1.msra.mxu0 %v59
    %108 = vmatprep.subr.mxu0 0.0
    %109 = vmatpush1.msra.mxu0 %v58
    %110 = vmatprep.subr.mxu0 0.0
    %111 = vmatpush2.msra.mxu0 0.0
    %112 = vmatprep.subr.mxu0 0.0
    %113 = vmatpush2.msra.mxu0 0.0
    %114 = vmatprep.subr.mxu0 0.0
    %115 = vmatpush2.msra.mxu0 0.0
    %116 = vmatprep.subr.mxu0 0.0
    %117 = vmatpush2.msra.mxu0 0.0
    %118 = vmatprep.subr.mxu0 0.0
    %119 = vmatpush2.msra.mxu0 0.0
    %120 = vmatprep.subr.mxu0 0.0
    %121 = vmatpush2.msra.mxu0 0.0
    %122 = vmatprep.subr.mxu0 0.0
    %123 = vmatpush2.msra.mxu0 0.0
    %124 = vmatprep.subr.mxu0 0.0
    %125 = vmatpush2.msra.mxu0 0.0
    %126 = vmatprep.subr.mxu0 0.0
    %127 = vmatpush2.msra.mxu0 0.0
    %128 = vmatprep.subr.mxu0 0.0
    %129 = vmatpush2.msra.mxu0 0.0
    %130 = vmatprep.subr.mxu0 0.0
    %131 = vmatpush2.msra.mxu0 0.0
    %132 = vmatprep.subr.mxu0 0.0
    %133 = vmatpush2.msra.mxu0 0.0
    %134 = vmatprep.subr.mxu0 0.0
    %135 = vmatpush2.msra.mxu0 0.0
    %136 = vmatprep.subr.mxu0 0.0
    %137 = vmatpush2.msra.mxu0 0.0
    %138 = vmatprep.subr.mxu0 0.0
    %139 = vmatpush2.msra.mxu0 0.0
    %140 = vmatprep.subr.mxu0 0.0
    %141 = vmatpush2.msra.mxu0 0.0
    %142 = vmatprep.mubr.f32.mxu0 0.0
    %143 = vmatmul.mubr.f32.gmra.mxu0 %v73
    %v144 = vpop.f32.mrf.mxu0
    %v145 = vadd.f32 %v69, %v144
    %v146 = vpop.f32.mrf.mxu0
    %147 = vmatprep.mubr.f32.mxu0 0.0
    %148 = vmatmul.mubr.f32.gmra.mxu0 %v76
    %v149 = vpop.f32.mrf.mxu0
    %v150 = vadd.f32 %v69, %v149
    %v151 = vpop.f32.mrf.mxu0
    %152 = vdwg.mxu0
    %v153 = vmax.f32 %v145, 0.0
    %v154 = vmax.f32 %v150, 0.0
    %v155 = vld [vmem:[%s5] sm:$0xff]
    %v156 = vld [vmem:[%s5 + $0x8] sm:$0xff]
    %v157 = vld [vmem:[%s5 + $0x10] sm:$0xff]
    %v158 = vld [vmem:[%s5 + $0x18] sm:$0xff]
    %v159 = vld [vmem:[%s5 + $0x20] sm:$0xff]
    %v160 = vld [vmem:[%s5 + $0x28] sm:$0xff]
    %v161 = vld [vmem:[%s5 + $0x30] sm:$0xff]
    %v162 = vld [vmem:[%s5 + $0x38] sm:$0xff]
    %v163 = vld [vmem:[%s5 + $0x40] sm:$0xff]
    %v164 = vld [vmem:[%s5 + $0x48] sm:$0xff]
    %v165 = vld [vmem:[%s5 + $0x50] sm:$0xff]
    %v166 = vld [vmem:[%s5 + $0x58] sm:$0xff]
    %v167 = vld [vmem:[%s5 + $0x60] sm:$0xff]
    %v168 = vld [vmem:[%s5 + $0x68] sm:$0xff]
    %v169 = vld [vmem:[%s5 + $0x70] sm:$0xff]
    %v170 = vld [vmem:[%s5 + $0x78] sm:$0xff]
    %v171 = vld [vmem:[%s6] sm:$0x1]
    %v173 = vlaneseq
    %v174 = vshrl.u32 %v173, 7
    %v175 = vsub.s32 0, %v174
    %v176 = vrot.slane %v171, %v175
    %178 = vmatprep.subr.mxu0 0.0
    %179 = vmatpush1.msra.mxu0 %v170
    %180 = vmatprep.subr.mxu0 0.0
    %181 = vmatpush1.msra.mxu0 %v169
    %182 = vmatprep.subr.mxu0 0.0
    %183 = vmatpush1.msra.mxu0 %v168
    %184 = vmatprep.subr.mxu0 0.0
    %185 = vmatpush1.msra.mxu0 %v167
    %186 = vmatprep.subr.mxu0 0.0
    %187 = vmatpush1.msra.mxu0 %v166
    %188 = vmatprep.subr.mxu0 0.0
    %189 = vmatpush1.msra.mxu0 %v165
    %190 = vmatprep.subr.mxu0 0.0
    %191 = vmatpush1.msra.mxu0 %v164
    %192 = vmatprep.subr.mxu0 0.0
    %193 = vmatpush1.msra.mxu0 %v163
    %194 = vmatprep.subr.mxu0 0.0
    %195 = vmatpush1.msra.mxu0 %v162
    %196 = vmatprep.subr.mxu0 0.0
    %197 = vmatpush1.msra.mxu0 %v161
    %198 = vmatprep.subr.mxu0 0.0
    %199 = vmatpush1.msra.mxu0 %v160
    %200 = vmatprep.subr.mxu0 0.0
    %201 = vmatpush1.msra.mxu0 %v159
    %202 = vmatprep.subr.mxu0 0.0
    %203 = vmatpush1.msra.mxu0 %v158
    %204 = vmatprep.subr.mxu0 0.0
    %205 = vmatpush1.msra.mxu0 %v157
    %206 = vmatprep.subr.mxu0 0.0
    %207 = vmatpush1.msra.mxu0 %v156
    %208 = vmatprep.subr.mxu0 0.0
    %209 = vmatpush1.msra.mxu0 %v155
    %210 = vmatprep.subr.mxu0 0.0
    %211 = vmatpush2.msra.mxu0 0.0
    %212 = vmatprep.subr.mxu0 0.0
    %213 = vmatpush2.msra.mxu0 0.0
    %214 = vmatprep.subr.mxu0 0.0
    %215 = vmatpush2.msra.mxu0 0.0
    %216 = vmatprep.subr.mxu0 0.0
    %217 = vmatpush2.msra.mxu0 0.0
    %218 = vmatprep.subr.mxu0 0.0
    %219 = vmatpush2.msra.mxu0 0.0
    %220 = vmatprep.subr.mxu0 0.0
    %221 = vmatpush2.msra.mxu0 0.0
    %222 = vmatprep.subr.mxu0 0.0
    %223 = vmatpush2.msra.mxu0 0.0
    %224 = vmatprep.subr.mxu0 0.0
    %225 = vmatpush2.msra.mxu0 0.0
    %226 = vmatprep.subr.mxu0 0.0
    %227 = vmatpush2.msra.mxu0 0.0
    %228 = vmatprep.subr.mxu0 0.0
    %229 = vmatpush2.msra.mxu0 0.0
    %230 = vmatprep.subr.mxu0 0.0
    %231 = vmatpush2.msra.mxu0 0.0
    %232 = vmatprep.subr.mxu0 0.0
    %233 = vmatpush2.msra.mxu0 0.0
    %234 = vmatprep.subr.mxu0 0.0
    %235 = vmatpush2.msra.mxu0 0.0
    %236 = vmatprep.subr.mxu0 0.0
    %237 = vmatpush2.msra.mxu0 0.0
    %238 = vmatprep.subr.mxu0 0.0
    %239 = vmatpush2.msra.mxu0 0.0
    %240 = vmatprep.subr.mxu0 0.0
    %241 = vmatpush2.msra.mxu0 0.0
    %242 = vmatprep.mubr.f32.mxu0 0.0
    %243 = vmatmul.mubr.f32.gmra.mxu0 %v153
    %v244 = vpop.f32.mrf.mxu0
    %v245 = vadd.f32 %v176, %v244
    %v246 = vpop.f32.mrf.mxu0
    %247 = vmatprep.mubr.f32.mxu0 0.0
    %248 = vmatmul.mubr.f32.gmra.mxu0 %v154
    %v249 = vpop.f32.mrf.mxu0
    %v250 = vadd.f32 %v176, %v249
    %v251 = vpop.f32.mrf.mxu0
    %252 = vdwg.mxu0
    %v253 = vmax.f32 %v245, 0.0
    %v254 = vmax.f32 %v250, 0.0
    %v255 = vld [vmem:[%s7] sm:$0xff]
    %v256 = vld [vmem:[%s7 + $0x8] sm:$0xff]
    %v257 = vld [vmem:[%s7 + $0x10] sm:$0xff]
    %v258 = vld [vmem:[%s7 + $0x18] sm:$0xff]
    %v259 = vld [vmem:[%s7 + $0x20] sm:$0xff]
    %v260 = vld [vmem:[%s7 + $0x28] sm:$0xff]
    %v261 = vld [vmem:[%s7 + $0x30] sm:$0xff]
    %v262 = vld [vmem:[%s7 + $0x38] sm:$0xff]
    %v263 = vld [vmem:[%s7 + $0x40] sm:$0xff]
    %v264 = vld [vmem:[%s7 + $0x48] sm:$0xff]
    %v265 = vld [vmem:[%s7 + $0x50] sm:$0xff]
    %v266 = vld [vmem:[%s7 + $0x58] sm:$0xff]
    %v267 = vld [vmem:[%s7 + $0x60] sm:$0xff]
    %v268 = vld [vmem:[%s7 + $0x68] sm:$0xff]
    %v269 = vld [vmem:[%s7 + $0x70] sm:$0xff]
    %v270 = vld [vmem:[%s7 + $0x78] sm:$0xff]
    %s271 = sld [smem:[#allocation2]]
    %v272 = vld [vmem:[%s2] sm:$0xff]
    %v273 = vld [vmem:[%s2 + $0x8] sm:$0xff]
    %v274 = vstv %s271
    %v275 = vmul.f32 %v274, %v272
    %v276 = vmul.f32 %v274, %v273
    %277 = vmatprep.subr.mxu0 0.0
    %278 = vmatpush1.msra.mxu0 %v270
    %279 = vmatprep.subr.mxu0 0.0
    %280 = vmatpush1.msra.mxu0 %v269
    %281 = vmatprep.subr.mxu0 0.0
    %282 = vmatpush1.msra.mxu0 %v268
    %283 = vmatprep.subr.mxu0 0.0
    %284 = vmatpush1.msra.mxu0 %v267
    %285 = vmatprep.subr.mxu0 0.0
    %286 = vmatpush1.msra.mxu0 %v266
    %287 = vmatprep.subr.mxu0 0.0
    %288 = vmatpush1.msra.mxu0 %v265
    %289 = vmatprep.subr.mxu0 0.0
    %290 = vmatpush1.msra.mxu0 %v264
    %291 = vmatprep.subr.mxu0 0.0
    %292 = vmatpush1.msra.mxu0 %v263
    %293 = vmatprep.subr.mxu0 0.0
    %294 = vmatpush1.msra.mxu0 %v262
    %295 = vmatprep.subr.mxu0 0.0
    %296 = vmatpush1.msra.mxu0 %v261
    %297 = vmatprep.subr.mxu0 0.0
    %298 = vmatpush1.msra.mxu0 %v260
    %299 = vmatprep.subr.mxu0 0.0
    %300 = vmatpush1.msra.mxu0 %v259
    %301 = vmatprep.subr.mxu0 0.0
    %302 = vmatpush1.msra.mxu0 %v258
    %303 = vmatprep.subr.mxu0 0.0
    %304 = vmatpush1.msra.mxu0 %v257
    %305 = vmatprep.subr.mxu0 0.0
    %306 = vmatpush1.msra.mxu0 %v256
    %307 = vmatprep.subr.mxu0 0.0
    %308 = vmatpush1.msra.mxu0 %v255
    %309 = vmatprep.subr.mxu0 0.0
    %310 = vmatpush2.msra.mxu0 0.0
    %311 = vmatprep.subr.mxu0 0.0
    %312 = vmatpush2.msra.mxu0 0.0
    %313 = vmatprep.subr.mxu0 0.0
    %314 = vmatpush2.msra.mxu0 0.0
    %315 = vmatprep.subr.mxu0 0.0
    %316 = vmatpush2.msra.mxu0 0.0
    %317 = vmatprep.subr.mxu0 0.0
    %318 = vmatpush2.msra.mxu0 0.0
    %319 = vmatprep.subr.mxu0 0.0
    %320 = vmatpush2.msra.mxu0 0.0
    %321 = vmatprep.subr.mxu0 0.0
    %322 = vmatpush2.msra.mxu0 0.0
    %323 = vmatprep.subr.mxu0 0.0
    %324 = vmatpush2.msra.mxu0 0.0
    %325 = vmatprep.subr.mxu0 0.0
    %326 = vmatpush2.msra.mxu0 0.0
    %327 = vmatprep.subr.mxu0 0.0
    %328 = vmatpush2.msra.mxu0 0.0
    %329 = vmatprep.subr.mxu0 0.0
    %330 = vmatpush2.msra.mxu0 0.0
    %331 = vmatprep.subr.mxu0 0.0
    %332 = vmatpush2.msra.mxu0 0.0
    %333 = vmatprep.subr.mxu0 0.0
    %334 = vmatpush2.msra.mxu0 0.0
    %335 = vmatprep.subr.mxu0 0.0
    %336 = vmatpush2.msra.mxu0 0.0
    %337 = vmatprep.subr.mxu0 0.0
    %338 = vmatpush2.msra.mxu0 0.0
    %339 = vmatprep.subr.mxu0 0.0
    %340 = vmatpush2.msra.mxu0 0.0
    %341 = vmatprep.mubr.f32.mxu0 0.0
    %342 = vmatmul.mubr.f32.gmra.mxu0 %v253
    %v343 = vpop.f32.mrf.mxu0
    %v344 = vadd.f32 %v275, %v343
    %v345 = vpop.f32.mrf.mxu0
    %346 = vmatprep.mubr.f32.mxu0 0.0
    %347 = vmatmul.mubr.f32.gmra.mxu0 %v254
    %v348 = vpop.f32.mrf.mxu0
    %v349 = vadd.f32 %v276, %v348
    %v350 = vpop.f32.mrf.mxu0
    %351 = vdwg.mxu0
    %s352 = sld [smem:[#allocation2 + $0x1]]
    %v353 = vstv %s352
    %v354 = vadd.f32 %v344, %v353
    %v355 = vadd.f32 %v349, %v353
    %vm356 = vcmask 7168
    %357 = vst.msk [vmem:[%s8] sm:$0xff] %vm356, %v354
    %358 = vst.msk [vmem:[%s8 + $0x8] sm:$0xff] %vm356, %v355
    // Predicated region
    $region42: #{tpu_custom_call.1} parent=1 // pred_check
      _
    $region43: #{tpu_custom_call.1} parent=1 // pred_check_branch
      %360 = sbr.rel (0) target = $region45
    $region44: #{tpu_custom_call.1} parent=1 // pred_region
      _
    $region45: #{tpu_custom_call.1} parent=1 // pred_fallthru
      _
    // Predicated region
    $region46: #{tpu_custom_call.1} parent=1 // pred_check
      _
    $region47: #{tpu_custom_call.1} parent=1 // pred_check_branch
      %362 = sbr.rel (0) target = $region49
    $region48: #{tpu_custom_call.1} parent=1 // pred_region
      _
    $region49: #{tpu_custom_call.1} parent=1 // pred_fallthru
      _
    %363 = vsyncpa [#allocation3], 1
    %364 = vsyncpa [#allocation4], 1

</llo_original>
